<compile_context>
chip_gen: v5e
topology: v5e:2x2
jax: 0.10.0
libtpu: 0.0.40
codegen_flags: <defaults>
</compile_context>

<pallas_src>
import functools

import jax
import jax.numpy as jnp
from jax.experimental import pallas as pl
from jax.experimental.pallas import tpu as pltpu

_OUT_LANES = 128  # lane-dense output width


def _rnn_kernel(x_ref,        # (T*B, D)   time-major, batch padded, flattened
                w_ih_t_ref,   # (D, H)
                w_hh_t_ref,   # (H, H)
                p_ref,        # (8, P_LANES) packed small parameter vectors
                o_ref,        # (B, 128)   lane-dense output
                *, seq_len, batch, hidden):
    # --- Unpack the packed parameter tile (static slices, zero-cost views) ---
    params = p_ref[...]
    b_row  = params[0:1, :hidden]     # b_ih + b_hh (pre-summed)
    gamma  = params[1:2, :hidden]     # LayerNorm gamma
    beta   = params[2:3, :hidden]     # LayerNorm beta
    w_head = params[3:4, :hidden]     # fused fc1∘fc2 weight row (W2 @ W1)
    b_head = params[4, 0]             # fused head bias (scalar)

    # --- Hoisted, time-parallel input projection: one MXU pass instead of T ---
    # P[t*B + b] = x[t, b] @ W_ih^T + (b_ih + b_hh)
    p_all = (jnp.dot(x_ref[...], w_ih_t_ref[...],
                     preferred_element_type=jnp.float32) + b_row)

    w_hh_t = w_hh_t_ref[...]

    # --- Serial tanh recurrence, fully unrolled (seq_len is small & static).
    # Static row-slices of p_all -> no dynamic indexing on the critical path.
    # TODO(synk): at larger T, keep W_hh staged in the MXU weight registers
    # (pltpu.matmul_push_rhs / matmul_acc_lhs / matmul_pop) across the loop.
    h = jnp.zeros((batch, hidden), jnp.float32)
    for t in range(seq_len):
        p_t = p_all[t * batch:(t + 1) * batch, :]
        h = jnp.tanh(p_t + jnp.dot(h, w_hh_t,
                                   preferred_element_type=jnp.float32))

    # --- LayerNorm over the hidden dim (biased variance, eps=1e-5, PyTorch) ---
    # Two independent XLU reduces, then mean/var (shorter dependency chain).
    s1 = jnp.sum(h, axis=-1, keepdims=True)
    s2 = jnp.sum(h * h, axis=-1, keepdims=True)
    inv_h = 1.0 / hidden
    mean = s1 * inv_h
    var = jnp.maximum(s2 * inv_h - mean * mean, 0.0)   # |h|<1 post-tanh; clamp rounding
    y = (h - mean) * jax.lax.rsqrt(var + 1e-5)
    y = y * gamma + beta

    # dropout1 / dropout2: eval mode -> identity.
    # fc1∘fc2 folded: out = y @ (W2 @ W1)^T + (b1 @ W2^T + b2)
    # VPU multiply + lane reduction (skip a near-empty MXU pass).
    out = jnp.sum(y * w_head, axis=-1, keepdims=True) + b_head     # (B, 1)

    # Lane-dense store: broadcast the per-row scalar across 128 lanes.
    o_ref[...] = jnp.broadcast_to(out, o_ref.shape).astype(o_ref.dtype)


def simple_rnn_forward(x, params):
    """x: (B, T, D) batch-first float32 (PyTorch layout). Returns (B, 1)."""
    B, T, D = x.shape
    H = params["w_ih"].shape[0]

    # Pad batch to a full sublane group so every vector op is unmasked.
    B_pad = max(8, -(-B // 8) * 8)
    x_p = jnp.pad(x, ((0, B_pad - B), (0, 0), (0, 0)))            # (B_pad, T, D)
    # One fused XLA copy: pad + time-major transpose + flatten to (T*B_pad, D).
    # TODO(synk): when a time grid is added, consume x in native (B,T,D) layout
    # via a BlockSpec index_map instead of this wrapper copy.
    x_tm = jnp.transpose(x_p, (1, 0, 2)).reshape(T * B_pad, D)

    w_ih_t = params["w_ih"].T                                     # (D, H)
    w_hh_t = params["w_hh"].T                                     # (H, H)

    # Algebraic fc1∘fc2 fold (dropout = identity in eval mode):
    #   out = y @ (W2 @ W1)^T + (b1 @ W2^T + b2)
    w_head = (params["w_fc2"] @ params["w_fc1"]).reshape(H)       # (H,)
    b_head = (params["b_fc1"] @ params["w_fc2"].T + params["b_fc2"])[0]

    # Pack all tiny vectors into one (8, P_LANES) f32 parameter tile
    # (single DMA instead of six).
    p_lanes = max(_OUT_LANES, -(-H // 128) * 128)
    ptile = jnp.zeros((8, p_lanes), jnp.float32)
    ptile = ptile.at[0, :H].set(params["b_ih"] + params["b_hh"])
    ptile = ptile.at[1, :H].set(params["ln_gamma"])
    ptile = ptile.at[2, :H].set(params["ln_beta"])
    ptile = ptile.at[3, :H].set(w_head)
    ptile = ptile.at[4, 0].set(b_head)

    # Advisory cost estimate so XLA can schedule surrounding ops around the call.
    flops = 2 * T * B_pad * D * H + 2 * T * B_pad * H * H + 12 * B_pad * H
    bytes_accessed = 4 * (x_tm.size + w_ih_t.size + w_hh_t.size
                          + ptile.size + B_pad * _OUT_LANES)
    cost = pl.CostEstimate(flops=flops,
                           transcendentals=T * B_pad * H + B_pad,
                           bytes_accessed=bytes_accessed)

    # Single invocation, no grid: every operand is a full array resident in VMEM.
    # 32 MiB scoped VMEM is explicit so the budget is identical on v5e (16 MiB
    # default) / v6e / v7x (64 MiB physical per TC).
    out_padded = pl.pallas_call(
        functools.partial(_rnn_kernel, seq_len=T, batch=B_pad, hidden=H),
        out_shape=jax.ShapeDtypeStruct((B_pad, _OUT_LANES), jnp.float32),
        cost_estimate=cost,
        compiler_params=pltpu.CompilerParams(vmem_limit_bytes=32 << 20),
    )(x_tm, w_ih_t, w_hh_t, ptile)

    return out_padded[:B, :1]


def _reference_forward(x, p):
    """Pure-JAX reference mirroring the PyTorch module (eval mode)."""
    B, T, D = x.shape
    H = p["w_ih"].shape[0]
    h = jnp.zeros((B, H), jnp.float32)
    for t in range(T):
        h = jnp.tanh(x[:, t, :] @ p["w_ih"].T + p["b_ih"]
                     + h @ p["w_hh"].T + p["b_hh"])
    mean = jnp.mean(h, axis=-1, keepdims=True)
    var = jnp.mean(jnp.square(h - mean), axis=-1, keepdims=True)
    y = (h - mean) / jnp.sqrt(var + 1e-5) * p["ln_gamma"] + p["ln_beta"]
    y = y @ p["w_fc1"].T + p["b_fc1"]
    y = y @ p["w_fc2"].T + p["b_fc2"]
    return y


def init_params(key, input_size, rnn_units, dense_units):
    ks = jax.random.split(key, 8)
    s_rnn = 1.0 / jnp.sqrt(rnn_units)
    s_fc1 = 1.0 / jnp.sqrt(rnn_units)
    s_fc2 = 1.0 / jnp.sqrt(dense_units)
    u = lambda k, shape, s: jax.random.uniform(k, shape, jnp.float32, -s, s)
    return {
        "w_ih": u(ks[0], (rnn_units, input_size), s_rnn),
        "w_hh": u(ks[1], (rnn_units, rnn_units), s_rnn),
        "b_ih": u(ks[2], (rnn_units,), s_rnn),
        "b_hh": u(ks[3], (rnn_units,), s_rnn),
        "ln_gamma": jnp.ones((rnn_units,), jnp.float32),
        "ln_beta": jnp.zeros((rnn_units,), jnp.float32),
        "w_fc1": u(ks[4], (dense_units, rnn_units), s_fc1),
        "b_fc1": u(ks[5], (dense_units,), s_fc1),
        "w_fc2": u(ks[6], (1, dense_units), s_fc2),
        "b_fc2": u(ks[7], (1,), s_fc2),
    }


if __name__ == "__main__":
    B, T, D = 2, 8, 16          # batch, seq, input_size
    H, DENSE = 32, 16           # rnn_units, dense_units

    key = jax.random.PRNGKey(0)
    kx, kp = jax.random.split(key)
    x = jax.random.normal(kx, (B, T, D), jnp.float32)
    params = init_params(kp, D, H, DENSE)

    out = simple_rnn_forward(x, params)
    out = jax.block_until_ready(out)

    ref = _reference_forward(x, params)
    assert out.shape == (B, 1)
    # fc1/fc2 fold and E[x^2]-mean^2 variance shift results only by f32
    # reassociation — well within the tolerance.
    assert jnp.allclose(out, ref, atol=1e-4, rtol=1e-4), (out, ref)

    print("KERNEL_OK")
</pallas_src>

<mosaic_0001>
module attributes {stable_mosaic.version = 11 : i64} {
  func.func @_rnn_kernel(%arg0: memref<64x16xf32, #tpu.memory_space<vmem>>, %arg1: memref<16x32xf32, #tpu.memory_space<vmem>>, %arg2: memref<32x32xf32, #tpu.memory_space<vmem>>, %arg3: memref<8x128xf32, #tpu.memory_space<vmem>>, %arg4: memref<8x128xf32, #tpu.memory_space<vmem>>) attributes {dimension_semantics = [], scalar_prefetch = 0 : i64, scratch_operands = 0 : i64, tpu.core_type = #tpu.core_type<tc>} {
    %c0 = arith.constant 0 : index
    %c0_0 = arith.constant 0 : index
    %0 = vector.load %arg3[%c0, %c0_0] : memref<8x128xf32, #tpu.memory_space<vmem>>, vector<8x128xf32>
    %1 = vector.extract_strided_slice %0 {offsets = [0, 0], sizes = [1, 32], strides = [1, 1]} : vector<8x128xf32> to vector<1x32xf32>
    %2 = vector.extract_strided_slice %0 {offsets = [1, 0], sizes = [1, 32], strides = [1, 1]} : vector<8x128xf32> to vector<1x32xf32>
    %3 = vector.extract_strided_slice %0 {offsets = [2, 0], sizes = [1, 32], strides = [1, 1]} : vector<8x128xf32> to vector<1x32xf32>
    %4 = vector.extract_strided_slice %0 {offsets = [3, 0], sizes = [1, 32], strides = [1, 1]} : vector<8x128xf32> to vector<1x32xf32>
    %5 = vector.extract_strided_slice %0 {offsets = [4, 0], sizes = [1, 1], strides = [1, 1]} : vector<8x128xf32> to vector<1x1xf32>
    %6 = vector.extract %5[0, 0] : f32 from vector<1x1xf32>
    %c0_1 = arith.constant 0 : index
    %c0_2 = arith.constant 0 : index
    %7 = vector.load %arg0[%c0_1, %c0_2] : memref<64x16xf32, #tpu.memory_space<vmem>>, vector<64x16xf32>
    %c0_3 = arith.constant 0 : index
    %c0_4 = arith.constant 0 : index
    %8 = vector.load %arg1[%c0_3, %c0_4] : memref<16x32xf32, #tpu.memory_space<vmem>>, vector<16x32xf32>
    %cst = arith.constant dense<0.000000e+00> : vector<64x32xf32>
    %9 = tpu.matmul %7, %8, %cst {dimension_numbers = #tpu.dot_dimension_numbers<[1], [0], [0], [1], [0, 0, 1, 1], [], []>} : vector<64x16xf32>, vector<16x32xf32>, vector<64x32xf32> -> vector<64x32xf32>
    %10 = vector.broadcast %1 : vector<1x32xf32> to vector<64x32xf32>
    %11 = arith.addf %9, %10 : vector<64x32xf32>
    %c0_5 = arith.constant 0 : index
    %c0_6 = arith.constant 0 : index
    %12 = vector.load %arg2[%c0_5, %c0_6] : memref<32x32xf32, #tpu.memory_space<vmem>>, vector<32x32xf32>
    %cst_7 = arith.constant 0.000000e+00 : f32
    %13 = vector.broadcast %cst_7 : f32 to vector<8x32xf32>
    %14 = vector.extract_strided_slice %11 {offsets = [0, 0], sizes = [8, 32], strides = [1, 1]} : vector<64x32xf32> to vector<8x32xf32>
    %cst_8 = arith.constant dense<0.000000e+00> : vector<8x32xf32>
    %15 = tpu.matmul %13, %12, %cst_8 {dimension_numbers = #tpu.dot_dimension_numbers<[1], [0], [0], [1], [0, 0, 1, 1], [], []>} : vector<8x32xf32>, vector<32x32xf32>, vector<8x32xf32> -> vector<8x32xf32>
    %16 = arith.addf %14, %15 : vector<8x32xf32>
    %17 = math.tanh %16 : vector<8x32xf32>
    %18 = vector.extract_strided_slice %11 {offsets = [8, 0], sizes = [8, 32], strides = [1, 1]} : vector<64x32xf32> to vector<8x32xf32>
    %cst_9 = arith.constant dense<0.000000e+00> : vector<8x32xf32>
    %19 = tpu.matmul %17, %12, %cst_9 {dimension_numbers = #tpu.dot_dimension_numbers<[1], [0], [0], [1], [0, 0, 1, 1], [], []>} : vector<8x32xf32>, vector<32x32xf32>, vector<8x32xf32> -> vector<8x32xf32>
    %20 = arith.addf %18, %19 : vector<8x32xf32>
    %21 = math.tanh %20 : vector<8x32xf32>
    %22 = vector.extract_strided_slice %11 {offsets = [16, 0], sizes = [8, 32], strides = [1, 1]} : vector<64x32xf32> to vector<8x32xf32>
    %cst_10 = arith.constant dense<0.000000e+00> : vector<8x32xf32>
    %23 = tpu.matmul %21, %12, %cst_10 {dimension_numbers = #tpu.dot_dimension_numbers<[1], [0], [0], [1], [0, 0, 1, 1], [], []>} : vector<8x32xf32>, vector<32x32xf32>, vector<8x32xf32> -> vector<8x32xf32>
    %24 = arith.addf %22, %23 : vector<8x32xf32>
    %25 = math.tanh %24 : vector<8x32xf32>
    %26 = vector.extract_strided_slice %11 {offsets = [24, 0], sizes = [8, 32], strides = [1, 1]} : vector<64x32xf32> to vector<8x32xf32>
    %cst_11 = arith.constant dense<0.000000e+00> : vector<8x32xf32>
    %27 = tpu.matmul %25, %12, %cst_11 {dimension_numbers = #tpu.dot_dimension_numbers<[1], [0], [0], [1], [0, 0, 1, 1], [], []>} : vector<8x32xf32>, vector<32x32xf32>, vector<8x32xf32> -> vector<8x32xf32>
    %28 = arith.addf %26, %27 : vector<8x32xf32>
    %29 = math.tanh %28 : vector<8x32xf32>
    %30 = vector.extract_strided_slice %11 {offsets = [32, 0], sizes = [8, 32], strides = [1, 1]} : vector<64x32xf32> to vector<8x32xf32>
    %cst_12 = arith.constant dense<0.000000e+00> : vector<8x32xf32>
    %31 = tpu.matmul %29, %12, %cst_12 {dimension_numbers = #tpu.dot_dimension_numbers<[1], [0], [0], [1], [0, 0, 1, 1], [], []>} : vector<8x32xf32>, vector<32x32xf32>, vector<8x32xf32> -> vector<8x32xf32>
    %32 = arith.addf %30, %31 : vector<8x32xf32>
    %33 = math.tanh %32 : vector<8x32xf32>
    %34 = vector.extract_strided_slice %11 {offsets = [40, 0], sizes = [8, 32], strides = [1, 1]} : vector<64x32xf32> to vector<8x32xf32>
    %cst_13 = arith.constant dense<0.000000e+00> : vector<8x32xf32>
    %35 = tpu.matmul %33, %12, %cst_13 {dimension_numbers = #tpu.dot_dimension_numbers<[1], [0], [0], [1], [0, 0, 1, 1], [], []>} : vector<8x32xf32>, vector<32x32xf32>, vector<8x32xf32> -> vector<8x32xf32>
    %36 = arith.addf %34, %35 : vector<8x32xf32>
    %37 = math.tanh %36 : vector<8x32xf32>
    %38 = vector.extract_strided_slice %11 {offsets = [48, 0], sizes = [8, 32], strides = [1, 1]} : vector<64x32xf32> to vector<8x32xf32>
    %cst_14 = arith.constant dense<0.000000e+00> : vector<8x32xf32>
    %39 = tpu.matmul %37, %12, %cst_14 {dimension_numbers = #tpu.dot_dimension_numbers<[1], [0], [0], [1], [0, 0, 1, 1], [], []>} : vector<8x32xf32>, vector<32x32xf32>, vector<8x32xf32> -> vector<8x32xf32>
    %40 = arith.addf %38, %39 : vector<8x32xf32>
    %41 = math.tanh %40 : vector<8x32xf32>
    %42 = vector.extract_strided_slice %11 {offsets = [56, 0], sizes = [8, 32], strides = [1, 1]} : vector<64x32xf32> to vector<8x32xf32>
    %cst_15 = arith.constant dense<0.000000e+00> : vector<8x32xf32>
    %43 = tpu.matmul %41, %12, %cst_15 {dimension_numbers = #tpu.dot_dimension_numbers<[1], [0], [0], [1], [0, 0, 1, 1], [], []>} : vector<8x32xf32>, vector<32x32xf32>, vector<8x32xf32> -> vector<8x32xf32>
    %44 = arith.addf %42, %43 : vector<8x32xf32>
    %45 = math.tanh %44 : vector<8x32xf32>
    %cst_16 = arith.constant dense<0.000000e+00> : vector<8xf32>
    %46 = vector.multi_reduction <add>, %45, %cst_16 [1] : vector<8x32xf32> to vector<8xf32>
    %47 = vector.shape_cast %46 : vector<8xf32> to vector<8x1xf32>
    %48 = arith.mulf %45, %45 : vector<8x32xf32>
    %cst_17 = arith.constant dense<0.000000e+00> : vector<8xf32>
    %49 = vector.multi_reduction <add>, %48, %cst_17 [1] : vector<8x32xf32> to vector<8xf32>
    %50 = vector.shape_cast %49 : vector<8xf32> to vector<8x1xf32>
    %cst_18 = arith.constant 3.125000e-02 : f32
    %51 = vector.broadcast %cst_18 : f32 to vector<8x1xf32>
    %52 = arith.mulf %47, %51 : vector<8x1xf32>
    %cst_19 = arith.constant 3.125000e-02 : f32
    %53 = vector.broadcast %cst_19 : f32 to vector<8x1xf32>
    %54 = arith.mulf %50, %53 : vector<8x1xf32>
    %55 = arith.mulf %52, %52 : vector<8x1xf32>
    %56 = arith.subf %54, %55 : vector<8x1xf32>
    %cst_20 = arith.constant 0.000000e+00 : f32
    %57 = vector.broadcast %cst_20 : f32 to vector<8x1xf32>
    %58 = arith.maximumf %56, %57 : vector<8x1xf32>
    %59 = vector.broadcast %52 : vector<8x1xf32> to vector<8x32xf32>
    %60 = arith.subf %45, %59 : vector<8x32xf32>
    %cst_21 = arith.constant 9.99999974E-6 : f32
    %61 = vector.broadcast %cst_21 : f32 to vector<8x1xf32>
    %62 = arith.addf %58, %61 : vector<8x1xf32>
    %63 = math.rsqrt %62 : vector<8x1xf32>
    %64 = vector.broadcast %63 : vector<8x1xf32> to vector<8x32xf32>
    %65 = arith.mulf %60, %64 : vector<8x32xf32>
    %66 = vector.broadcast %2 : vector<1x32xf32> to vector<8x32xf32>
    %67 = arith.mulf %65, %66 : vector<8x32xf32>
    %68 = vector.broadcast %3 : vector<1x32xf32> to vector<8x32xf32>
    %69 = arith.addf %67, %68 : vector<8x32xf32>
    %70 = vector.broadcast %4 : vector<1x32xf32> to vector<8x32xf32>
    %71 = arith.mulf %69, %70 : vector<8x32xf32>
    %cst_22 = arith.constant dense<0.000000e+00> : vector<8xf32>
    %72 = vector.multi_reduction <add>, %71, %cst_22 [1] : vector<8x32xf32> to vector<8xf32>
    %73 = vector.shape_cast %72 : vector<8xf32> to vector<8x1xf32>
    %74 = vector.broadcast %6 : f32 to vector<8x1xf32>
    %75 = arith.addf %73, %74 : vector<8x1xf32>
    %76 = vector.shape_cast %75 : vector<8x1xf32> to vector<8x1xf32>
    %77 = vector.broadcast %76 : vector<8x1xf32> to vector<8x128xf32>
    %c0_23 = arith.constant 0 : index
    %c0_24 = arith.constant 0 : index
    %78 = vector.load %arg4[%c0_23, %c0_24] : memref<8x128xf32, #tpu.memory_space<vmem>>, vector<8x128xf32>
    tpu.vector_store %arg4[%c0_23, %c0_24], %77 {strides = array<i32>} : memref<8x128xf32, #tpu.memory_space<vmem>>, vector<8x128xf32>,
    return
  }
}

</mosaic_0001>

<llo_original>
// kernel: tpu_custom_call.1
$region0: #{tpu_custom_call.1}
  #allocation0 [shape = 'u32[]', space=smem, size = 0x4, offset = 0x4, fixed_abs, tag = 'smem constant byte address 0x4 - core index']
  #allocation1 [shape = 'u32[72,128]{1,0:T(1,128)}', space=vmem, size = 0x9000, scoped, tag = 'internal scratch']
  %s0 = inlined_call_operand.vmem [shape: f32[64,16], index: 0, kind: input, shape index: {}]
  %s1 = inlined_call_operand.vmem [shape: f32[16,32], index: 1, kind: input, shape index: {}]
  %s2 = inlined_call_operand.vmem [shape: f32[32,32], index: 2, kind: input, shape index: {}]
  %s3 = inlined_call_operand.vmem [shape: f32[8,128], index: 3, kind: input, shape index: {}]
  %s4 = inlined_call_operand.hbm [shape: f32[8,128], index: 4, kind: output, shape index: {}]
  %s5 = sld [smem:[#allocation0]]
  $region26: #{tpu_custom_call.1} parent=0
    _
  %s7 = ssub.s32 1, %s5
  %s8 = scalar_select 0, %s7, %s5
  $region1: #{tpu_custom_call.1} parent=0
    #allocation2 [shape = 'u8[4096]{0}', space=vmem, size = 0x1000, scoped, tag = 'output window, operand 0, single buffered']
    #allocation3 [shape = 's32[1]{0}', space=sflag, size = 0x4, scoped, tag = 'scoped memory for tpu_custom_call.1']
    %9 = vsyncpa [#allocation3], 0
    // Predicated region
    $region2: #{tpu_custom_call.1} parent=1 // pred_check
      _
    $region3: #{tpu_custom_call.1} parent=1 // pred_check_branch
      %11 = sbr.rel (0) target = $region5
    $region4: #{tpu_custom_call.1} parent=1 // pred_region
      _
    $region5: #{tpu_custom_call.1} parent=1 // pred_fallthru
      _
    // Predicated region
    $region6: #{tpu_custom_call.1} parent=1 // pred_check
      _
    $region7: #{tpu_custom_call.1} parent=1 // pred_check_branch
      %13 = sbr.rel (0) target = $region9
    $region8: #{tpu_custom_call.1} parent=1 // pred_region
      _
    $region9: #{tpu_custom_call.1} parent=1 // pred_fallthru
      _
    // Predicated region
    $region10: #{tpu_custom_call.1} parent=1 // pred_check
      _
    $region11: #{tpu_custom_call.1} parent=1 // pred_check_branch
      %15 = sbr.rel (0) target = $region13
    $region12: #{tpu_custom_call.1} parent=1 // pred_region
      _
    $region13: #{tpu_custom_call.1} parent=1 // pred_fallthru
      _
    // Predicated region
    $region14: #{tpu_custom_call.1} parent=1 // pred_check
      _
    $region15: #{tpu_custom_call.1} parent=1 // pred_check_branch
      %17 = sbr.rel (0) target = $region17
    $region16: #{tpu_custom_call.1} parent=1 // pred_region
      _
    $region17: #{tpu_custom_call.1} parent=1 // pred_fallthru
      _
    %v18 = vld [vmem:[%s3] sm:$0xff]
    %v19 = vrot.slane %v18, 4
    %s20 = vtos %v19
    %v21 = vld [vmem:[%s0] sm:$0xff]
    %v22 = vld [vmem:[%s0 + $0x8] sm:$0xff]
    %v23 = vld [vmem:[%s0 + $0x10] sm:$0xff]
    %v24 = vld [vmem:[%s0 + $0x18] sm:$0xff]
    %v25 = vld [vmem:[%s0 + $0x20] sm:$0xff]
    %v26 = vld [vmem:[%s0 + $0x28] sm:$0xff]
    %v27 = vld [vmem:[%s0 + $0x30] sm:$0xff]
    %v28 = vld [vmem:[%s0 + $0x38] sm:$0xff]
    %v29 = vld [vmem:[%s1] sm:$0xff]
    %v30 = vld [vmem:[%s1 + $0x8] sm:$0xff]
    %v31 = vperm.slane %v18, 0
    %vm32 = vcmask 130048
    %v34 = vsel %vm32, %v21, 0
    %v37 = vsel %vm32, %v22, 0
    %v40 = vsel %vm32, %v23, 0
    %v43 = vsel %vm32, %v24, 0
    %v46 = vsel %vm32, %v25, 0
    %v49 = vsel %vm32, %v26, 0
    %v52 = vsel %vm32, %v27, 0
    %v55 = vsel %vm32, %v28, 0
    %57 = vmatpush.msra.mxu0 0.0
    %58 = vmatpush.msra.mxu0 0.0
    %59 = vmatpush.msra.mxu0 0.0
    %60 = vmatpush.msra.mxu0 0.0
    %61 = vmatpush.msra.mxu0 0.0
    %62 = vmatpush.msra.mxu0 0.0
    %63 = vmatpush.msra.mxu0 0.0
    %64 = vmatpush.msra.mxu0 0.0
    %65 = vmatpush.msra.mxu0 0.0
    %66 = vmatpush.msra.mxu0 0.0
    %67 = vmatpush.msra.mxu0 0.0
    %68 = vmatpush.msra.mxu0 0.0
    %69 = vmatpush.msra.mxu0 0.0
    %70 = vmatpush.msra.mxu0 0.0
    %71 = vmatpush.msra.mxu0 %v30
    %72 = vmatpush.msra.mxu0 %v29
    %73 = vmatmul.f32.gmra.mxu0 %v34
    %v74 = vpop.f32.mrf.mxu0
    %v75 = vadd.f32 %v31, %v74
    %76 = vmatmul.f32.gmra.mxu0 %v37
    %v77 = vpop.f32.mrf.mxu0
    %v78 = vadd.f32 %v31, %v77
    %79 = vmatmul.f32.gmra.mxu0 %v40
    %v80 = vpop.f32.mrf.mxu0
    %v81 = vadd.f32 %v31, %v80
    %82 = vmatmul.f32.gmra.mxu0 %v43
    %v83 = vpop.f32.mrf.mxu0
    %v84 = vadd.f32 %v31, %v83
    %85 = vmatmul.f32.gmra.mxu0 %v46
    %v86 = vpop.f32.mrf.mxu0
    %v87 = vadd.f32 %v31, %v86
    %88 = vmatmul.f32.gmra.mxu0 %v49
    %v89 = vpop.f32.mrf.mxu0
    %v90 = vadd.f32 %v31, %v89
    %91 = vmatmul.f32.gmra.mxu0 %v52
    %v92 = vpop.f32.mrf.mxu0
    %v93 = vadd.f32 %v31, %v92
    %94 = vmatmul.f32.gmra.mxu0 %v55
    %v95 = vpop.f32.mrf.mxu0
    %v96 = vadd.f32 %v31, %v95
    %97 = vdwg.mxu0
    %v98 = vld [vmem:[%s2] sm:$0xff]
    %v99 = vld [vmem:[%s2 + $0x8] sm:$0xff]
    %v100 = vld [vmem:[%s2 + $0x10] sm:$0xff]
    %v101 = vld [vmem:[%s2 + $0x18] sm:$0xff]
    %vm102 = vcmask 261120
    %v104 = vsel %vm102, 0.0, 0
    %106 = vmatpush.msra.mxu0 0.0
    %107 = vmatpush.msra.mxu0 0.0
    %108 = vmatpush.msra.mxu0 0.0
    %109 = vmatpush.msra.mxu0 0.0
    %110 = vmatpush.msra.mxu0 0.0
    %111 = vmatpush.msra.mxu0 0.0
    %112 = vmatpush.msra.mxu0 0.0
    %113 = vmatpush.msra.mxu0 0.0
    %114 = vmatpush.msra.mxu0 0.0
    %115 = vmatpush.msra.mxu0 0.0
    %116 = vmatpush.msra.mxu0 0.0
    %117 = vmatpush.msra.mxu0 0.0
    %118 = vmatpush.msra.mxu0 %v101
    %119 = vmatpush.msra.mxu0 %v100
    %120 = vmatpush.msra.mxu0 %v99
    %121 = vmatpush.msra.mxu0 %v98
    %122 = vmatmul.f32.gmra.mxu0 %v104
    %v123 = vpop.f32.mrf.mxu0
    %v124 = vadd.f32 0.0, %v123
    %125 = vdwg.mxu0
    %v126 = vadd.f32 %v75, %v124
    %v127 = vtanh.pop %v126
    %v129 = vsel %vm102, %v127, 0
    %131 = vmatpush.msra.mxu0 0.0
    %132 = vmatpush.msra.mxu0 0.0
    %133 = vmatpush.msra.mxu0 0.0
    %134 = vmatpush.msra.mxu0 0.0
    %135 = vmatpush.msra.mxu0 0.0
    %136 = vmatpush.msra.mxu0 0.0
    %137 = vmatpush.msra.mxu0 0.0
    %138 = vmatpush.msra.mxu0 0.0
    %139 = vmatpush.msra.mxu0 0.0
    %140 = vmatpush.msra.mxu0 0.0
    %141 = vmatpush.msra.mxu0 0.0
    %142 = vmatpush.msra.mxu0 0.0
    %143 = vmatpush.msra.mxu0 %v101
    %144 = vmatpush.msra.mxu0 %v100
    %145 = vmatpush.msra.mxu0 %v99
    %146 = vmatpush.msra.mxu0 %v98
    %147 = vmatmul.f32.gmra.mxu0 %v129
    %v148 = vpop.f32.mrf.mxu0
    %v149 = vadd.f32 0.0, %v148
    %150 = vdwg.mxu0
    %v151 = vadd.f32 %v78, %v149
    %v152 = vtanh.pop %v151
    %v154 = vsel %vm102, %v152, 0
    %156 = vmatpush.msra.mxu0 0.0
    %157 = vmatpush.msra.mxu0 0.0
    %158 = vmatpush.msra.mxu0 0.0
    %159 = vmatpush.msra.mxu0 0.0
    %160 = vmatpush.msra.mxu0 0.0
    %161 = vmatpush.msra.mxu0 0.0
    %162 = vmatpush.msra.mxu0 0.0
    %163 = vmatpush.msra.mxu0 0.0
    %164 = vmatpush.msra.mxu0 0.0
    %165 = vmatpush.msra.mxu0 0.0
    %166 = vmatpush.msra.mxu0 0.0
    %167 = vmatpush.msra.mxu0 0.0
    %168 = vmatpush.msra.mxu0 %v101
    %169 = vmatpush.msra.mxu0 %v100
    %170 = vmatpush.msra.mxu0 %v99
    %171 = vmatpush.msra.mxu0 %v98
    %172 = vmatmul.f32.gmra.mxu0 %v154
    %v173 = vpop.f32.mrf.mxu0
    %v174 = vadd.f32 0.0, %v173
    %175 = vdwg.mxu0
    %v176 = vadd.f32 %v81, %v174
    %v177 = vtanh.pop %v176
    %v179 = vsel %vm102, %v177, 0
    %181 = vmatpush.msra.mxu0 0.0
    %182 = vmatpush.msra.mxu0 0.0
    %183 = vmatpush.msra.mxu0 0.0
    %184 = vmatpush.msra.mxu0 0.0
    %185 = vmatpush.msra.mxu0 0.0
    %186 = vmatpush.msra.mxu0 0.0
    %187 = vmatpush.msra.mxu0 0.0
    %188 = vmatpush.msra.mxu0 0.0
    %189 = vmatpush.msra.mxu0 0.0
    %190 = vmatpush.msra.mxu0 0.0
    %191 = vmatpush.msra.mxu0 0.0
    %192 = vmatpush.msra.mxu0 0.0
    %193 = vmatpush.msra.mxu0 %v101
    %194 = vmatpush.msra.mxu0 %v100
    %195 = vmatpush.msra.mxu0 %v99
    %196 = vmatpush.msra.mxu0 %v98
    %197 = vmatmul.f32.gmra.mxu0 %v179
    %v198 = vpop.f32.mrf.mxu0
    %v199 = vadd.f32 0.0, %v198
    %200 = vdwg.mxu0
    %v201 = vadd.f32 %v84, %v199
    %v202 = vtanh.pop %v201
    %v204 = vsel %vm102, %v202, 0
    %206 = vmatpush.msra.mxu0 0.0
    %207 = vmatpush.msra.mxu0 0.0
    %208 = vmatpush.msra.mxu0 0.0
    %209 = vmatpush.msra.mxu0 0.0
    %210 = vmatpush.msra.mxu0 0.0
    %211 = vmatpush.msra.mxu0 0.0
    %212 = vmatpush.msra.mxu0 0.0
    %213 = vmatpush.msra.mxu0 0.0
    %214 = vmatpush.msra.mxu0 0.0
    %215 = vmatpush.msra.mxu0 0.0
    %216 = vmatpush.msra.mxu0 0.0
    %217 = vmatpush.msra.mxu0 0.0
    %218 = vmatpush.msra.mxu0 %v101
    %219 = vmatpush.msra.mxu0 %v100
    %220 = vmatpush.msra.mxu0 %v99
    %221 = vmatpush.msra.mxu0 %v98
    %222 = vmatmul.f32.gmra.mxu0 %v204
    %v223 = vpop.f32.mrf.mxu0
    %v224 = vadd.f32 0.0, %v223
    %225 = vdwg.mxu0
    %v226 = vadd.f32 %v87, %v224
    %v227 = vtanh.pop %v226
    %v229 = vsel %vm102, %v227, 0
    %231 = vmatpush.msra.mxu0 0.0
    %232 = vmatpush.msra.mxu0 0.0
    %233 = vmatpush.msra.mxu0 0.0
    %234 = vmatpush.msra.mxu0 0.0
    %235 = vmatpush.msra.mxu0 0.0
    %236 = vmatpush.msra.mxu0 0.0
    %237 = vmatpush.msra.mxu0 0.0
    %238 = vmatpush.msra.mxu0 0.0
    %239 = vmatpush.msra.mxu0 0.0
    %240 = vmatpush.msra.mxu0 0.0
    %241 = vmatpush.msra.mxu0 0.0
    %242 = vmatpush.msra.mxu0 0.0
    %243 = vmatpush.msra.mxu0 %v101
    %244 = vmatpush.msra.mxu0 %v100
    %245 = vmatpush.msra.mxu0 %v99
    %246 = vmatpush.msra.mxu0 %v98
    %247 = vmatmul.f32.gmra.mxu0 %v229
    %v248 = vpop.f32.mrf.mxu0
    %v249 = vadd.f32 0.0, %v248
    %250 = vdwg.mxu0
    %v251 = vadd.f32 %v90, %v249
    %v252 = vtanh.pop %v251
    %v254 = vsel %vm102, %v252, 0
    %256 = vmatpush.msra.mxu0 0.0
    %257 = vmatpush.msra.mxu0 0.0
    %258 = vmatpush.msra.mxu0 0.0
    %259 = vmatpush.msra.mxu0 0.0
    %260 = vmatpush.msra.mxu0 0.0
    %261 = vmatpush.msra.mxu0 0.0
    %262 = vmatpush.msra.mxu0 0.0
    %263 = vmatpush.msra.mxu0 0.0
    %264 = vmatpush.msra.mxu0 0.0
    %265 = vmatpush.msra.mxu0 0.0
    %266 = vmatpush.msra.mxu0 0.0
    %267 = vmatpush.msra.mxu0 0.0
    %268 = vmatpush.msra.mxu0 %v101
    %269 = vmatpush.msra.mxu0 %v100
    %270 = vmatpush.msra.mxu0 %v99
    %271 = vmatpush.msra.mxu0 %v98
    %272 = vmatmul.f32.gmra.mxu0 %v254
    %v273 = vpop.f32.mrf.mxu0
    %v274 = vadd.f32 0.0, %v273
    %275 = vdwg.mxu0
    %v276 = vadd.f32 %v93, %v274
    %v277 = vtanh.pop %v276
    %v279 = vsel %vm102, %v277, 0
    %281 = vmatpush.msra.mxu0 0.0
    %282 = vmatpush.msra.mxu0 0.0
    %283 = vmatpush.msra.mxu0 0.0
    %284 = vmatpush.msra.mxu0 0.0
    %285 = vmatpush.msra.mxu0 0.0
    %286 = vmatpush.msra.mxu0 0.0
    %287 = vmatpush.msra.mxu0 0.0
    %288 = vmatpush.msra.mxu0 0.0
    %289 = vmatpush.msra.mxu0 0.0
    %290 = vmatpush.msra.mxu0 0.0
    %291 = vmatpush.msra.mxu0 0.0
    %292 = vmatpush.msra.mxu0 0.0
    %293 = vmatpush.msra.mxu0 %v101
    %294 = vmatpush.msra.mxu0 %v100
    %295 = vmatpush.msra.mxu0 %v99
    %296 = vmatpush.msra.mxu0 %v98
    %297 = vmatmul.f32.gmra.mxu0 %v279
    %v298 = vpop.f32.mrf.mxu0
    %v299 = vadd.f32 0.0, %v298
    %300 = vdwg.mxu0
    %v301 = vadd.f32 %v96, %v299
    %v302 = vtanh.pop %v301
    %v303 = vsel %vm102, %v302, 0.0
    %304 = vadd.xlane.f32.xlu0 %v303
    %v305 = vpop.xlane.xlu0 %304
    %v306 = vmul.f32 %v302, %v302
    %v307 = vsel %vm102, %v306, 0.0
    %308 = vadd.xlane.f32.xlu0 %v307
    %v309 = vpop.xlane.xlu0 %308
    %v310 = vmul.f32 %v305, 0.03125
    %v311 = vmul.f32 %v309, 0.03125
    %v312 = vmul.f32 %v310, %v310
    %v313 = vsub.f32 %v311, %v312
    %v314 = vmax.f32 %v313, 0.0
    %v315 = vsub.f32 %v302, %v310
    %v316 = vadd.f32 %v314, 1e-05
    %v317 = vrsqrt.pop %v316
    %v318 = vmul.f32 %v317, %v316
    %v319 = vmul.f32 %v318, %v317
    %v320 = vmul.f32 0.5, %v319
    %v321 = vsub.f32 1.5, %v320
    %v322 = vmul.f32 %v317, %v321
    %vm323 = vweird.f32 %v316
    %vm324 = vweird.f32 %v317
    %vm325 = vmor %vm323, %vm324
    %v326 = vsel %vm325, %v317, %v322
    %v327 = vmul.f32 %v315, %v326
    %v328 = vperm.slane %v18, 1
    %v329 = vmul.f32 %v327, %v328
    %v330 = vperm.slane %v18, 2
    %v331 = vadd.f32 %v329, %v330
    %v332 = vperm.slane %v18, 3
    %v333 = vmul.f32 %v331, %v332
    %v334 = vsel %vm102, %v333, 0.0
    %335 = vadd.xlane.f32.xlu0 %v334
    %v336 = vpop.xlane.xlu0 %335
    %v337 = vstv %s20
    %v338 = vadd.f32 %v336, %v337
    %339 = vst [vmem:[#allocation2] sm:$0xff] %v338
    // Predicated region
    $region18: #{tpu_custom_call.1} parent=1 // pred_check
      _
    $region19: #{tpu_custom_call.1} parent=1 // pred_check_branch
      %341 = sbr.rel (0) target = $region21
    $region20: #{tpu_custom_call.1} parent=1 // pred_region
      %343 = vsyncadd [#allocation3], 0
      %s345 = sshll.u32 [#allocation2], 4
      %s346 = int_to_ptr.vmem [resolvable:$true] %s345
      %s347 = sshll.u32 %s4, 4
      %s348 = int_to_ptr.hbm [resolvable:$true] %s347
      %350 = dma.vmem_to_hbm [thread:$0]  %s346, 128, %s348, [#allocation3]
    $region21: #{tpu_custom_call.1} parent=1 // pred_fallthru
      _
    // Predicated region
    $region22: #{tpu_custom_call.1} parent=1 // pred_check
      _
    $region23: #{tpu_custom_call.1} parent=1 // pred_check_branch
      %352 = sbr.rel (0) target = $region25
    $region24: #{tpu_custom_call.1} parent=1 // pred_region
      %354 = dma.done [#allocation3], 128
    $region25: #{tpu_custom_call.1} parent=1 // pred_fallthru
      _
    %355 = vsyncpa [#allocation3], 1

</llo_original>
